<compile_context>
chip_gen: v7x
topology: tpu7x:2x2x1
jax: 0.10.0
libtpu: 0.0.40
codegen_flags: <defaults>
</compile_context>

<pallas_src>
import functools

import jax
import jax.numpy as jnp
from jax.experimental import pallas as pl
from jax.experimental.pallas import tpu as pltpu

LANE = 128
SUBLANE = 8

FUSED_MAX_F32_BYTES = 4 * 1024 * 1024   # per-image f32 footprint cap for fused path
PACK_F32_BYTES = 2 * 1024 * 1024        # per-grid-step packing target (fused path)
TWO_PASS_TILE_BYTES = 2 * 1024 * 1024   # per-step input block target (fallback path)
VMEM_LIMIT_BYTES = 48 * 1024 * 1024     # <= v7x physical 64 MiB; ample on v5e/v6e


def _round_up(n, m):
    return ((n + m - 1) // m) * m


def _sublane_mult(dtype):
    # Packed sub-32-bit dtypes need 16/32-row granularity on the second-minor dim.
    return {4: 8, 2: 16, 1: 32}.get(jnp.dtype(dtype).itemsize, 8)


def _onehot00():
    r = jax.lax.broadcasted_iota(jnp.int32, (SUBLANE, LANE), 0)
    l = jax.lax.broadcasted_iota(jnp.int32, (SUBLANE, LANE), 1)
    return (r == 0) & (l == 0)


# ----------------------------- fused (1 HBM pass) -----------------------------


def _fused_kernel(x_ref, out_ref, *, bk, inv_hw):
    # x_ref: (bk, 3, H, W) native dtype; out_ref: (1, 8, 128) f32.
    total = jnp.float32(0.0)
    for i in range(bk):                          # static unroll over packed images
        x0 = x_ref[i, 0].astype(jnp.float32)
        x1 = x_ref[i, 1].astype(jnp.float32)
        x2 = x_ref[i, 2].astype(jnp.float32)
        m0 = jnp.sum(x0) * inv_hw                # per-channel means of this image
        m1 = jnp.sum(x1) * inv_hw
        m2 = jnp.sum(x2) * inv_hw
        d = x0 - m0                              # channel-unrolled: one live plane
        acc = d * d
        d = x1 - m1
        acc = acc + d * d
        d = x2 - m2
        acc = acc + d * d
        total = total + jnp.sum(jnp.sqrt(acc))   # sqrt -> EUP; reduce is shape-masked
    # Lane-dense (8,128) output block; scalar lives at [0, 0], rest exact zeros.
    out_ref[0] = jnp.where(_onehot00(), total, 0.0)


def _sa_loss_fused(x):
    b, c, h, w = x.shape
    hw = h * w
    sub = _sublane_mult(x.dtype)
    per_img_f32 = 3 * _round_up(h, sub) * _round_up(w, LANE) * 4

    # Pack bk images per grid step for small images, keeping >= 2 steps when
    # B >= 2 so both v7x TensorCores get sharded work.
    bk = 1
    for cand in range(2, b + 1):
        if b % cand != 0:
            continue
        if cand * per_img_f32 > PACK_F32_BYTES:
            break
        if b // cand < 2:
            break
        bk = cand
    n_steps = b // bk
    # TODO(synk): for B == 1 the fused grid has a single step (one idle TC on
    # v7x); splitting one image across cores would need a cross-step mean exchange.

    out = pl.pallas_call(
        functools.partial(_fused_kernel, bk=bk, inv_hw=1.0 / hw),
        out_shape=jax.ShapeDtypeStruct((n_steps, SUBLANE, LANE), jnp.float32),
        grid_spec=pltpu.PrefetchScalarGridSpec(
            num_scalar_prefetch=0,
            grid=(n_steps,),
            in_specs=[pl.BlockSpec((bk, 3, h, w), lambda g: (g, 0, 0, 0))],
            out_specs=pl.BlockSpec((1, SUBLANE, LANE), lambda g: (g, 0, 0)),
        ),
        compiler_params=pltpu.CompilerParams(
            dimension_semantics=("parallel",),
            vmem_limit_bytes=VMEM_LIMIT_BYTES,
        ),
    )(x)
    return (jnp.sum(out) / (b * hw)).astype(x.dtype)


# ------------------------- two-pass tiled fallback ---------------------------


def _channel_sum_kernel(x_ref, out_ref, *, th, h, need_mask):
    # x_ref: (1, 3, th, W); out_ref: (1, 3, 8, 128) — one (8,128) plane per channel.
    t = pl.program_id(1)
    onehot = _onehot00()
    if need_mask:                                # static: only if th doesn't divide H
        rem = h - t * th
        row = jax.lax.broadcasted_iota(jnp.int32, (th, x_ref.shape[-1]), 0)
        valid = row < rem
    for ch in range(3):
        xc = x_ref[0, ch].astype(jnp.float32)
        if need_mask:
            xc = jnp.where(valid, xc, 0.0)
        out_ref[0, ch] = jnp.where(onehot, jnp.sum(xc), 0.0)


def _sa_sum_kernel(means_ref, x_ref, out_ref, *, th, h, need_mask):
    # means_ref: (B, 3) f32 in SMEM; x_ref: (1, 3, th, W); out_ref: (1, 1, 8, 128).
    i = pl.program_id(0)
    t = pl.program_id(1)
    m0 = means_ref[i, 0]
    m1 = means_ref[i, 1]
    m2 = means_ref[i, 2]
    d = x_ref[0, 0].astype(jnp.float32) - m0     # scalar splat from SMEM
    acc = d * d
    d = x_ref[0, 1].astype(jnp.float32) - m1
    acc = acc + d * d
    d = x_ref[0, 2].astype(jnp.float32) - m2
    acc = acc + d * d
    k = jnp.sqrt(acc)
    if need_mask:                                # static: only the ragged-H case
        rem = h - t * th
        row = jax.lax.broadcasted_iota(jnp.int32, k.shape, 0)
        k = jnp.where(row < rem, k, 0.0)
    out_ref[0, 0] = jnp.where(_onehot00(), jnp.sum(k), 0.0)


def _sa_loss_two_pass(x, max_tile_rows=None):
    b, c, h, w = x.shape
    hw = h * w
    itemsize = jnp.dtype(x.dtype).itemsize
    sub = _sublane_mult(x.dtype)
    wp = _round_up(w, LANE)

    target_th = max(sub, (TWO_PASS_TILE_BYTES // (3 * wp * itemsize)) // sub * sub)
    if max_tile_rows is not None:
        target_th = max(sub, min(target_th, (max_tile_rows // sub) * sub))

    if target_th >= h:
        th = h
    else:
        # Prefer a row-tile that divides H (no tail masking at all).
        th = 0
        cand = target_th
        while cand >= sub:
            if h % cand == 0:
                th = cand
                break
            cand -= sub
        if th == 0:
            th = _round_up(pl.cdiv(h, pl.cdiv(h, target_th)), sub)
        if th >= h:
            th = h
    n_t = pl.cdiv(h, th)
    need_mask = (h % th) != 0

    x_spec = pl.BlockSpec((1, 3, th, w), lambda i, t: (i, 0, t, 0))
    cparams = pltpu.CompilerParams(
        dimension_semantics=("parallel", "parallel"),
        vmem_limit_bytes=VMEM_LIMIT_BYTES,
    )

    # Pass 1: per-(image, row-tile) channel sums -> per-image channel means.
    p1 = pl.pallas_call(
        functools.partial(_channel_sum_kernel, th=th, h=h, need_mask=need_mask),
        out_shape=jax.ShapeDtypeStruct((b, 3 * n_t, SUBLANE, LANE), jnp.float32),
        grid_spec=pltpu.PrefetchScalarGridSpec(
            num_scalar_prefetch=0,
            grid=(b, n_t),
            in_specs=[x_spec],
            out_specs=pl.BlockSpec((1, 3, SUBLANE, LANE), lambda i, t: (i, t, 0, 0)),
        ),
        compiler_params=cparams,
    )(x)
    ch_sums = jnp.sum(p1.reshape(b, n_t, 3, SUBLANE, LANE), axis=(1, 3, 4))
    means = (ch_sums / hw).astype(jnp.float32)              # (B, 3)

    # Pass 2: per-(image, row-tile) sums of sqrt(Dr^2 + Dg^2 + Db^2).
    p2 = pl.pallas_call(
        functools.partial(_sa_sum_kernel, th=th, h=h, need_mask=need_mask),
        out_shape=jax.ShapeDtypeStruct((b, n_t, SUBLANE, LANE), jnp.float32),
        grid_spec=pltpu.PrefetchScalarGridSpec(
            num_scalar_prefetch=0,
            grid=(b, n_t),
            in_specs=[
                pl.BlockSpec(memory_space=pltpu.MemorySpace.SMEM),  # means (whole array)
                x_spec,
            ],
            out_specs=pl.BlockSpec((1, 1, SUBLANE, LANE), lambda i, t: (i, t, 0, 0)),
        ),
        compiler_params=cparams,
    )(means, x)
    return (jnp.sum(p2) / (b * hw)).astype(x.dtype)


# --------------------------------- dispatcher ---------------------------------


@functools.partial(jax.jit, static_argnames=("force_two_pass", "max_tile_rows"))
def sa_loss(x, force_two_pass=False, max_tile_rows=None):
    """Sa_Loss.forward: mean over pixels of ||(r,g,b) - (mr,mg,mb)||_2."""
    b, c, h, w = x.shape
    assert c == 3, "Sa_Loss expects 3 channels (RGB)"
    sub = _sublane_mult(x.dtype)
    per_img_f32 = 3 * _round_up(h, sub) * _round_up(w, LANE) * 4
    if (not force_two_pass) and per_img_f32 <= FUSED_MAX_F32_BYTES:
        return _sa_loss_fused(x)
    return _sa_loss_two_pass(x, max_tile_rows=max_tile_rows)


def sa_loss_ref(x):
    """Pure-JAX reference mirroring the PyTorch module."""
    mean_rgb = jnp.mean(x, axis=(2, 3), keepdims=True)
    d = x - mean_rgb
    k = jnp.sqrt(jnp.sum(d * d, axis=1, keepdims=True))
    return jnp.mean(k)


if __name__ == "__main__":
    key = jax.random.PRNGKey(0)
    k1, k2 = jax.random.split(key)

    # Small example consistent with the module: batch=2, RGB, 16x16 images.
    x = jax.random.uniform(k1, (2, 3, 16, 16), dtype=jnp.float32)
    out = jax.block_until_ready(sa_loss(x))                 # fused single-pass path
    ref = sa_loss_ref(x)
    assert jnp.allclose(out, ref, rtol=1e-5, atol=1e-6), (out, ref)

    # Also exercise the tiled two-pass fallback, including the ragged row-tile
    # masking path (H=20 with 8-row tiles) and the SMEM means.
    x2 = jax.random.uniform(k2, (2, 3, 20, 48), dtype=jnp.float32)
    out2 = jax.block_until_ready(
        sa_loss(x2, force_two_pass=True, max_tile_rows=8))
    ref2 = sa_loss_ref(x2)
    assert jnp.allclose(out2, ref2, rtol=1e-5, atol=1e-6), (out2, ref2)

    print("KERNEL_OK")
</pallas_src>

<mosaic_0001>
module attributes {stable_mosaic.version = 11 : i64} {
  func.func @_fused_kernel(%arg0: i32, %arg1: memref<1x3x16x16xf32, #tpu.memory_space<vmem>>, %arg2: memref<1x8x128xf32, #tpu.memory_space<vmem>>) attributes {dimension_semantics = [#tpu.dimension_semantics<parallel>], iteration_bounds = array<i64: 2>, scalar_prefetch = 0 : i64, scratch_operands = 0 : i64, tpu.core_type = #tpu.core_type<tc>, window_params = [{transform_indices = @transform_0, window_bounds = array<i64: 1, 3, 16, 16>}, {transform_indices = @transform_1, window_bounds = array<i64: 1, 8, 128>}]} {
    %c0 = arith.constant 0 : index
    %c0_0 = arith.constant 0 : index
    %c0_1 = arith.constant 0 : index
    %c0_2 = arith.constant 0 : index
    %0 = vector.load %arg1[%c0, %c0_0, %c0_1, %c0_2] : memref<1x3x16x16xf32, #tpu.memory_space<vmem>>, vector<1x1x16x16xf32>
    %1 = vector.shape_cast %0 : vector<1x1x16x16xf32> to vector<16x16xf32>
    %c0_3 = arith.constant 0 : index
    %c1 = arith.constant 1 : index
    %c0_4 = arith.constant 0 : index
    %c0_5 = arith.constant 0 : index
    %2 = vector.load %arg1[%c0_3, %c1, %c0_4, %c0_5] : memref<1x3x16x16xf32, #tpu.memory_space<vmem>>, vector<1x1x16x16xf32>
    %3 = vector.shape_cast %2 : vector<1x1x16x16xf32> to vector<16x16xf32>
    %c0_6 = arith.constant 0 : index
    %c2 = arith.constant 2 : index
    %c0_7 = arith.constant 0 : index
    %c0_8 = arith.constant 0 : index
    %4 = vector.load %arg1[%c0_6, %c2, %c0_7, %c0_8] : memref<1x3x16x16xf32, #tpu.memory_space<vmem>>, vector<1x1x16x16xf32>
    %5 = vector.shape_cast %4 : vector<1x1x16x16xf32> to vector<16x16xf32>
    %6 = vector.shape_cast %1 : vector<16x16xf32> to vector<1x16x16xf32>
    %cst = arith.constant dense<0.000000e+00> : vector<1xf32>
    %7 = vector.multi_reduction <add>, %6, %cst [1, 2] : vector<1x16x16xf32> to vector<1xf32>
    %8 = vector.shape_cast %7 : vector<1xf32> to vector<1x1x1xf32>
    %9 = vector.extract %8[0, 0, 0] : f32 from vector<1x1x1xf32>
    %cst_9 = arith.constant 3.906250e-03 : f32
    %10 = arith.mulf %9, %cst_9 : f32
    %11 = vector.shape_cast %3 : vector<16x16xf32> to vector<1x16x16xf32>
    %cst_10 = arith.constant dense<0.000000e+00> : vector<1xf32>
    %12 = vector.multi_reduction <add>, %11, %cst_10 [1, 2] : vector<1x16x16xf32> to vector<1xf32>
    %13 = vector.shape_cast %12 : vector<1xf32> to vector<1x1x1xf32>
    %14 = vector.extract %13[0, 0, 0] : f32 from vector<1x1x1xf32>
    %cst_11 = arith.constant 3.906250e-03 : f32
    %15 = arith.mulf %14, %cst_11 : f32
    %16 = vector.shape_cast %5 : vector<16x16xf32> to vector<1x16x16xf32>
    %cst_12 = arith.constant dense<0.000000e+00> : vector<1xf32>
    %17 = vector.multi_reduction <add>, %16, %cst_12 [1, 2] : vector<1x16x16xf32> to vector<1xf32>
    %18 = vector.shape_cast %17 : vector<1xf32> to vector<1x1x1xf32>
    %19 = vector.extract %18[0, 0, 0] : f32 from vector<1x1x1xf32>
    %cst_13 = arith.constant 3.906250e-03 : f32
    %20 = arith.mulf %19, %cst_13 : f32
    %21 = vector.broadcast %10 : f32 to vector<16x16xf32>
    %22 = arith.subf %1, %21 : vector<16x16xf32>
    %23 = arith.mulf %22, %22 : vector<16x16xf32>
    %24 = vector.broadcast %15 : f32 to vector<16x16xf32>
    %25 = arith.subf %3, %24 : vector<16x16xf32>
    %26 = arith.mulf %25, %25 : vector<16x16xf32>
    %27 = arith.addf %23, %26 : vector<16x16xf32>
    %28 = vector.broadcast %20 : f32 to vector<16x16xf32>
    %29 = arith.subf %5, %28 : vector<16x16xf32>
    %30 = arith.mulf %29, %29 : vector<16x16xf32>
    %31 = arith.addf %27, %30 : vector<16x16xf32>
    %32 = math.sqrt %31 : vector<16x16xf32>
    %33 = vector.shape_cast %32 : vector<16x16xf32> to vector<1x16x16xf32>
    %cst_14 = arith.constant dense<0.000000e+00> : vector<1xf32>
    %34 = vector.multi_reduction <add>, %33, %cst_14 [1, 2] : vector<1x16x16xf32> to vector<1xf32>
    %35 = vector.shape_cast %34 : vector<1xf32> to vector<1x1x1xf32>
    %36 = vector.extract %35[0, 0, 0] : f32 from vector<1x1x1xf32>
    %cst_15 = arith.constant 0.000000e+00 : f32
    %37 = arith.addf %cst_15, %36 : f32
    %38 = tpu.iota {dimensions = array<i32: 0>} : vector<8x128xi32>
    %39 = tpu.iota {dimensions = array<i32: 1>} : vector<8x128xi32>
    %c0_i32 = arith.constant 0 : i32
    %40 = vector.broadcast %c0_i32 : i32 to vector<8x128xi32>
    %41 = arith.cmpi eq, %38, %40 : vector<8x128xi32>
    %c0_i32_16 = arith.constant 0 : i32
    %42 = vector.broadcast %c0_i32_16 : i32 to vector<8x128xi32>
    %43 = arith.cmpi eq, %39, %42 : vector<8x128xi32>
    %44 = arith.andi %41, %43 : vector<8x128xi1>
    %cst_17 = arith.constant 0.000000e+00 : f32
    %45 = vector.broadcast %37 : f32 to vector<8x128xf32>
    %46 = vector.broadcast %cst_17 : f32 to vector<8x128xf32>
    %47 = arith.select %44, %45, %46 : vector<8x128xi1>, vector<8x128xf32>
    %c0_18 = arith.constant 0 : index
    %c0_19 = arith.constant 0 : index
    %c0_20 = arith.constant 0 : index
    %48 = vector.load %arg2[%c0_18, %c0_19, %c0_20] : memref<1x8x128xf32, #tpu.memory_space<vmem>>, vector<1x8x128xf32>
    %49 = vector.shape_cast %48 : vector<1x8x128xf32> to vector<8x128xf32>
    %50 = vector.shape_cast %47 : vector<8x128xf32> to vector<1x8x128xf32>
    tpu.vector_store %arg2[%c0_18, %c0_19, %c0_20], %50 {strides = array<i32>} : memref<1x8x128xf32, #tpu.memory_space<vmem>>, vector<1x8x128xf32>,
    return
  }
  func.func @transform_0(%arg0: i32) -> (i32, i32, i32, i32) {
    %c0_i32 = arith.constant 0 : i32
    %c0_i32_0 = arith.constant 0 : i32
    %c0_i32_1 = arith.constant 0 : i32
    %c0_i32_2 = arith.constant 0 : i32
    return %arg0, %c0_i32, %c0_i32_0, %c0_i32_1 : i32, i32, i32, i32
  }
  func.func @transform_1(%arg0: i32) -> (i32, i32, i32) {
    %c0_i32 = arith.constant 0 : i32
    %c0_i32_0 = arith.constant 0 : i32
    %c0_i32_1 = arith.constant 0 : i32
    return %arg0, %c0_i32, %c0_i32_0 : i32, i32, i32
  }
}

</mosaic_0001>

<llo_original>
// kernel: sa_loss.1
$region0: #{sa_loss.1}
  #allocation0 [shape = 'u32[]', space=smem, size = 0x4, offset = 0x4, fixed_abs, tag = 'smem constant byte address 0x4 - core index']
  #allocation1 [shape = 'u32[144,128]{1,0:T(1,128)}', space=vmem, size = 0x12000, scoped, tag = 'internal scratch']
  %s0 = inlined_call_operand.hbm [shape: f32[2,3,16,16], index: 0, kind: input, shape index: {}]
  %s1 = inlined_call_operand.vmem [shape: f32[2,8,128], index: 1, kind: output, shape index: {}]
  %s2 = sld [smem:[#allocation0]]
  $region41: #{sa_loss.1} parent=0
    _
  %s4 = ssub.s32 1, %s2
  %s5 = scalar_select 0, %s4, %s2
  $region1: #{sa_loss.1} parent=0
    #allocation2 [shape = 'u8[49152]{0}', space=vmem, size = 0xc000, scoped, tag = 'input window, operand 0']
    #allocation3 [shape = 's32[2]{0}', space=sflag, size = 0x8, scoped, tag = 'scoped memory for sa_loss.1']
    %6 = vsyncpa [#allocation3], 0
    %s7 = scalar_lea.sflag [#allocation3], 1
    %8 = vsyncpa %s7, 0
    loop: start=0, step=1, limit=4
    $region2: #{sa_loss.1} parent=1 // loop_pre_header
      _
    $region3: #{sa_loss.1} parent=1 // loop_header
      %s10 = sphi 0, %s14
      %p11 = scmp.ge.s32.totalorder %s10, 4
      %s20 = sphi 0, %s22
      %s23 = sphi 0, %s20
      %s24 = sphi 0, %s23
      %s40 = sphi 0, %s24
      %s46 = sphi 0, %s48
      %s49 = sphi 0, %s46
      %s50 = sphi 0, %s49
      %s66 = sphi 0, %s50
    $region4: #{sa_loss.1} parent=1 // loop_header_branch
      %13 = sbr.rel (%p11) target = $region8
    $region5: #{sa_loss.1} parent=1 // loop_body
      %s15 = ssub.s32 %s10, 1
      %s16 = ssub.s32 %s10, 2
      %s17 = sadd.s32 %s10, 1
      %s18 = ssub.s32 %s10, %s17
      %p19 = scmp.eq.s32.totalorder %s18, 0
      %s21 = sadd.s32 %s20, 1
      %s22 = scalar_select %p19, %s20, %s21
      %p25 = pneg %p19
      %p26 = scmp.eq.s32.totalorder %s10, 1
      %p27 = por %p25, %p26
      %p28 = scmp.ne.s32.totalorder %s20, %s23
      %p29 = scmp.eq.s32.totalorder %s10, 0
      %p30 = por %p28, %p29
      %p31 = scmp.ne.s32.totalorder %s20, %s23
      %p32 = scmp.eq.s32.totalorder %s15, 1
      %p33 = por %p31, %p32
      %p34 = scmp.ne.s32.totalorder %s23, %s24
      %p35 = scmp.eq.s32.totalorder %s15, 0
      %p36 = por %p34, %p35
      %p37 = scmp.ne.s32.totalorder %s23, %s24
      %p38 = scmp.eq.s32.totalorder %s16, 1
      %p39 = por %p37, %p38
      %p41 = scmp.ne.s32.totalorder %s24, %s40
      %p42 = scmp.eq.s32.totalorder %s16, 0
      %p43 = por %p41, %p42
      %s44 = ssub.s32 %s10, %s17
      %p45 = scmp.eq.s32.totalorder %s44, 0
      %s47 = sadd.s32 %s46, 1
      %s48 = scalar_select %p45, %s46, %s47
      %p51 = pneg %p45
      %p52 = scmp.eq.s32.totalorder %s10, 1
      %p53 = por %p51, %p52
      %p54 = scmp.ne.s32.totalorder %s46, %s49
      %p55 = scmp.eq.s32.totalorder %s10, 0
      %p56 = por %p54, %p55
      %p57 = scmp.ne.s32.totalorder %s46, %s49
      %p58 = scmp.eq.s32.totalorder %s15, 1
      %p59 = por %p57, %p58
      %p60 = scmp.ne.s32.totalorder %s49, %s50
      %p61 = scmp.eq.s32.totalorder %s15, 0
      %p62 = por %p60, %p61
      %p63 = scmp.ne.s32.totalorder %s49, %s50
      %p64 = scmp.eq.s32.totalorder %s16, 1
      %p65 = por %p63, %p64
      %p67 = scmp.ne.s32.totalorder %s50, %s66
      %p68 = scmp.eq.s32.totalorder %s16, 0
      %p69 = por %p67, %p68
      %p70 = scmp.le.s32.totalorder 1, %s10
      %p71 = scmp.lt.s32.totalorder %s10, 3
      %p72 = pnand %p70, %p71
      %p73 = pneg %p72
      // Predicated region
      $region9: #{sa_loss.1} parent=5 // pred_check
        _
      $region10: #{sa_loss.1} parent=5 // pred_check_branch
        %75 = sbr.rel (%p72) target = $region12
      $region11: #{sa_loss.1} parent=5 // pred_region
        %s76 = ssub.s32 %s10, 1
      $region12: #{sa_loss.1} parent=5 // pred_fallthru
        _
      %p77 = scmp.lt.s32.totalorder %s10, 2
      // Predicated region
      $region13: #{sa_loss.1} parent=5 // pred_check
        %p78 = pneg %p77
      $region14: #{sa_loss.1} parent=5 // pred_check_branch
        %80 = sbr.rel (%p78) target = $region16
      $region15: #{sa_loss.1} parent=5 // pred_region
        // Predicated region
        $region17: #{sa_loss.1} parent=15 // pred_check
          %p81 = pneg %p30
        $region18: #{sa_loss.1} parent=15 // pred_check_branch
          %83 = sbr.rel (%p81) target = $region20
        $region19: #{sa_loss.1} parent=15 // pred_region
          %s84 = sand.u32 %s20, 1
          %s85 = scalar_lea.sflag [#allocation3], %s84
          %s86 = sand.u32 %s20, 1
          %s87 = smul.addr %s86, 48
          %s88 = scalar_lea.vmem [#allocation2], %s87
          %s90 = ssub.s32 768, 768
          %91 = vsyncadd %s85, %s90
          %s92 = smul.addr %s10, 6
          %s93 = smul.addr %s92, 128
          %s94 = scalar_lea.hbm %s0, %s93
          %s95 = sshll.u32 %s88, 4
          %s96 = int_to_ptr.vmem [resolvable:$true] %s95
          %101 = dma.hbm_to_vmem [thread:$0]  %s94, 768, %s96, %s85, 128, 128, 8
        $region20: #{sa_loss.1} parent=15 // pred_fallthru
          _
      $region16: #{sa_loss.1} parent=5 // pred_fallthru
        _
      %p102 = scmp.le.s32.totalorder 1, %s10
      %p103 = scmp.lt.s32.totalorder %s10, 3
      %p104 = pnand %p102, %p103
      %p105 = pneg %p104
      // Predicated region
      $region21: #{sa_loss.1} parent=5 // pred_check
        _
      $region22: #{sa_loss.1} parent=5 // pred_check_branch
        %107 = sbr.rel (%p104) target = $region24
      $region23: #{sa_loss.1} parent=5 // pred_region
        %s108 = ssub.s32 %s10, 1
        %s109 = sand.u32 %s23, 1
        %s110 = scalar_lea.sflag [#allocation3], %s109
        %s111 = sand.u32 %s23, 1
        %s112 = smul.addr %s111, 48
        %s113 = scalar_lea.vmem [#allocation2], %s112
        // Predicated region
        $region25: #{sa_loss.1} parent=23 // pred_check
          %p114 = pneg %p36
        $region26: #{sa_loss.1} parent=23 // pred_check_branch
          %116 = sbr.rel (%p114) target = $region28
        $region27: #{sa_loss.1} parent=23 // pred_region
          %117 = dma.done %s110, 768
        $region28: #{sa_loss.1} parent=23 // pred_fallthru
          _
        %s118 = sand.u32 %s23, 1
        %s119 = scalar_lea.sflag [#allocation3], %s118
        %s120 = sand.u32 %s23, 1
        %s121 = smul.addr %s120, 48
        %s122 = scalar_lea.vmem [#allocation2], %s121
        %p123 = pneg %p36
        %p124 = pneg %p33
        %p125 = pneg %p62
        %p126 = pneg %p59
        %p127 = scmp.lt.s32.totalorder %s15, 1
        %s128 = scalar_select %p127, %s15, 1
        %s129 = smul.addr %s128, 8
        %s130 = scalar_lea.vmem %s1, %s129
        %p131 = scmp.lt.s32.totalorder %s15, 1
        %s132 = scalar_select %p131, %s15, 1
        %s133 = smul.addr %s132, 8
        %s134 = scalar_lea.vmem %s1, %s133
        %v135 = vld [vmem:[%s113] sm:$0xff]
        %v136 = vld [vmem:[%s113 + $0x8] sm:$0xff]
        %s137 = scalar_lea.vmem %s113, 16 [#allocation2]
        %v138 = vld [vmem:[%s137] sm:$0xff]
        %v139 = vld [vmem:[%s137 + $0x8] sm:$0xff]
        %s140 = scalar_lea.vmem %s113, 32 [#allocation2]
        %v141 = vld [vmem:[%s140] sm:$0xff]
        %v142 = vld [vmem:[%s140 + $0x8] sm:$0xff]
        %vm143 = vcmask 130048
        %v144 = vsel %vm143, %v135, 0.0
        %v145 = vsel %vm143, %v136, 0.0
        %v146 = vadd.f32 %v144, %v145
        %147 = vadd.xlane.f32.xlu0 %v146
        %v148 = vpop.xlane.xlu0 %147
        %v149 = vrot.slane %v148, 4
        %v150 = vadd.f32 %v148, %v149
        %v151 = vrot.slane %v150, 2
        %v152 = vadd.f32 %v150, %v151
        %v153 = vrot.slane %v152, 1
        %v154 = vadd.f32 %v152, %v153
        %s155 = vtos %v154
        %s156 = smul.f32 %s155, 0.00390625
        %v157 = vsel %vm143, %v138, 0.0
        %v158 = vsel %vm143, %v139, 0.0
        %v159 = vadd.f32 %v157, %v158
        %160 = vadd.xlane.f32.xlu0 %v159
        %v161 = vpop.xlane.xlu0 %160
        %v162 = vrot.slane %v161, 4
        %v163 = vadd.f32 %v161, %v162
        %v164 = vrot.slane %v163, 2
        %v165 = vadd.f32 %v163, %v164
        %v166 = vrot.slane %v165, 1
        %v167 = vadd.f32 %v165, %v166
        %s168 = vtos %v167
        %s169 = smul.f32 %s168, 0.00390625
        %v170 = vsel %vm143, %v141, 0.0
        %v171 = vsel %vm143, %v142, 0.0
        %v172 = vadd.f32 %v170, %v171
        %173 = vadd.xlane.f32.xlu0 %v172
        %v174 = vpop.xlane.xlu0 %173
        %v175 = vrot.slane %v174, 4
        %v176 = vadd.f32 %v174, %v175
        %v177 = vrot.slane %v176, 2
        %v178 = vadd.f32 %v176, %v177
        %v179 = vrot.slane %v178, 1
        %v180 = vadd.f32 %v178, %v179
        %s181 = vtos %v180
        %s182 = smul.f32 %s181, 0.00390625
        %v183 = vstv %s156
        %v184 = vsub.f32 %v135, %v183
        %v185 = vsub.f32 %v136, %v183
        %v186 = vmul.f32 %v184, %v184
        %v187 = vmul.f32 %v185, %v185
        %v188 = vstv %s169
        %v189 = vsub.f32 %v138, %v188
        %v190 = vsub.f32 %v139, %v188
        %v191 = vmul.f32 %v189, %v189
        %v192 = vmul.f32 %v190, %v190
        %v193 = vadd.f32 %v186, %v191
        %v194 = vadd.f32 %v187, %v192
        %v195 = vstv %s182
        %v196 = vsub.f32 %v141, %v195
        %v197 = vsub.f32 %v142, %v195
        %v198 = vmul.f32 %v196, %v196
        %v199 = vmul.f32 %v197, %v197
        %v200 = vadd.f32 %v193, %v198
        %v201 = vadd.f32 %v194, %v199
        %v202 = vrsqrt.pop %v200
        %v203 = vmul.f32 %v200, %v202
        %vm204 = vcmp.eq.f32.partialorder %v200, inf
        %v205 = vsel %vm204, %v200, %v203
        %vm206 = vcmp.eq.f32.partialorder %v200, 0.0
        %v207 = vand.u32 %v200, 2147483648
        %v208 = vsel %vm206, %v207, %v205
        %v209 = vrsqrt.pop %v201
        %v210 = vmul.f32 %v201, %v209
        %vm211 = vcmp.eq.f32.partialorder %v201, inf
        %v212 = vsel %vm211, %v201, %v210
        %vm213 = vcmp.eq.f32.partialorder %v201, 0.0
        %v214 = vand.u32 %v201, 2147483648
        %v215 = vsel %vm213, %v214, %v212
        %v216 = vsel %vm143, %v208, 0.0
        %v217 = vsel %vm143, %v215, 0.0
        %v218 = vadd.f32 %v216, %v217
        %219 = vadd.xlane.f32.xlu0 %v218
        %v220 = vpop.xlane.xlu0 %219
        %v221 = vrot.slane %v220, 4
        %v222 = vadd.f32 %v220, %v221
        %v223 = vrot.slane %v222, 2
        %v224 = vadd.f32 %v222, %v223
        %v225 = vrot.slane %v224, 1
        %v226 = vadd.f32 %v224, %v225
        %s227 = vtos %v226
        %s228 = sadd.f32 %s227, 0.0
        %v229 = vlaneseq
        %v230 = vshrl.u32 %v229, 7
        %v231 = vlaneseq
        %v232 = vand.u32 %v231, 127
        %vm233 = vcmp.eq.s32.totalorder %v230, 0
        %vm234 = vcmp.eq.s32.totalorder %v232, 0
        %vm235 = vmand %vm233, %vm234
        %v236 = vstv %s228
        %v237 = vsel %vm235, %v236, 0.0
        %238 = vst [vmem:[%s134] sm:$0xff] %v237
        %p239 = scmp.lt.s32.totalorder %s15, 1
        %s240 = scalar_select %p239, %s15, 1
        %s241 = smul.addr %s240, 8
        %s242 = scalar_lea.vmem %s1, %s241
        // Predicated region
        $region29: #{sa_loss.1} parent=23 // pred_check
          %p243 = pneg %p59
        $region30: #{sa_loss.1} parent=23 // pred_check_branch
          %245 = sbr.rel (%p243) target = $region32
        $region31: #{sa_loss.1} parent=23 // pred_region
          _
        $region32: #{sa_loss.1} parent=23 // pred_fallthru
          _
      $region24: #{sa_loss.1} parent=5 // pred_fallthru
        _
      %p246 = scmp.le.s32.totalorder 2, %s10
      // Predicated region
      $region33: #{sa_loss.1} parent=5 // pred_check
        %p247 = pneg %p246
      $region34: #{sa_loss.1} parent=5 // pred_check_branch
        %249 = sbr.rel (%p247) target = $region36
      $region35: #{sa_loss.1} parent=5 // pred_region
        %s250 = ssub.s32 %s10, 2
        // Predicated region
        $region37: #{sa_loss.1} parent=35 // pred_check
          %p251 = pneg %p65
        $region38: #{sa_loss.1} parent=35 // pred_check_branch
          %253 = sbr.rel (%p251) target = $region40
        $region39: #{sa_loss.1} parent=35 // pred_region
          %p254 = scmp.lt.s32.totalorder %s16, 1
          %s255 = scalar_select %p254, %s16, 1
          %s256 = smul.addr %s255, 8
          %s257 = scalar_lea.vmem %s1, %s256
        $region40: #{sa_loss.1} parent=35 // pred_fallthru
          _
      $region36: #{sa_loss.1} parent=5 // pred_fallthru
        _
    $region6: #{sa_loss.1} parent=1 // loop_footer
      %s14 = sadd.s32 1, %s10
    $region7: #{sa_loss.1} parent=1 // loop_footer_branch
      %9 = sbr.rel target = $region3
    $region8: #{sa_loss.1} parent=1 // loop_exit
      _
    %258 = vsyncpa [#allocation3], 1
    %s259 = scalar_lea.sflag [#allocation3], 1
    %260 = vsyncpa %s259, 1

</llo_original>
